<compile_context>
chip_gen: v7x
topology: tpu7x:2x2x1
jax: 0.10.0
libtpu: 0.0.40
codegen_flags: <defaults>
</compile_context>

<pallas_src>
import math

import jax
import jax.numpy as jnp
from jax import lax
from jax.experimental import pallas as pl
from jax.experimental.pallas import tpu as pltpu


SOBEL_X = ((-1.0, 0.0, 1.0), (-2.0, 0.0, 2.0), (-1.0, 0.0, 1.0))
SOBEL_Y = ((-1.0, -2.0, -1.0), (0.0, 0.0, 0.0), (1.0, 2.0, 1.0))


# ----------------------------------------------------------------------------
# Pallas kernel (one grid step == one batch element)
# ----------------------------------------------------------------------------
def _make_nca_kernel(H, W):
    HW = H * W

    def kernel(flag_ref,                    # SMEM (1,) int32 : 1 iff alive_ratio < 0.2
               x_ref,                       # VMEM (1, C, H*W)  state, pixels in lanes
               w1t_ref, b1_ref,             # VMEM (HID, 3C), (HID, 1)
               w2t_ref, b2_ref,             # VMEM (HID, HID), (HID, 1)
               w3t_ref, b3_ref,             # VMEM (C, HID),  (C, 1)   (rate pre-folded)
               out_ref):                    # VMEM (1, C, H*W) dense output slab
        C = x_ref.shape[1]
        x = x_ref[0]                                           # (C, HW) f32

        # lane p holds pixel (p // W, p % W)
        lane = lax.broadcasted_iota(jnp.int32, (1, HW), 1)
        if (W & (W - 1)) == 0:
            col = jnp.bitwise_and(lane, W - 1)                 # p % W (pow-2 W: bit ops)
        else:
            # TODO(synk): general-W fallback uses vector i32 remainder.
            col = jnp.remainder(lane, W)

        dx = jnp.zeros((C, HW), jnp.float32)
        dy = jnp.zeros((C, HW), jnp.float32)
        nbr_max = x                                            # running 3x3 window max

        for di in (-1, 0, 1):
            for dj in (-1, 0, 1):
                if di == 0 and dj == 0:
                    continue
                # After this XLU roll, lane p holds the (di, dj) neighbour of
                # pixel p; lanes whose neighbour is outside the image wrapped
                # around and are masked to zero below -- which is exactly the
                # zero padding of the reference convs / avg-pool.
                nb = pltpu.roll(x, shift=(-(di * W + dj)) % HW, axis=1)
                conds = []
                if di == -1:
                    conds.append(lane >= W)                    # row >= 1
                elif di == 1:
                    conds.append(lane < (H - 1) * W)           # row <= H-2
                if dj == -1:
                    conds.append(col >= 1)
                elif dj == 1:
                    conds.append(col <= W - 2)
                valid = conds[0]
                for c in conds[1:]:
                    valid = jnp.logical_and(valid, c)
                nb = jnp.where(valid, nb, 0.0)

                sx = SOBEL_X[di + 1][dj + 1]
                sy = SOBEL_Y[di + 1][dj + 1]
                if sx == 1.0:
                    dx = dx + nb
                elif sx == -1.0:
                    dx = dx - nb
                elif sx != 0.0:
                    dx = dx + sx * nb
                if sy == 1.0:
                    dy = dy + nb
                elif sy == -1.0:
                    dy = dy - nb
                elif sy != 0.0:
                    dy = dy + sy * nb
                nbr_max = jnp.maximum(nbr_max, nb)

        # One K-fused layer-1 matmul; every matmul has N = HW = 256 lanes.
        perceived = jnp.concatenate([x, dx, dy], axis=0)       # (3C, HW)
        h1 = jnp.maximum(
            jnp.dot(w1t_ref[...], perceived,
                    preferred_element_type=jnp.float32) + b1_ref[...], 0.0)
        h2 = jnp.maximum(
            jnp.dot(w2t_ref[...], h1,
                    preferred_element_type=jnp.float32) + b2_ref[...], 0.0)
        # growth_rate * growth_boost already folded into w3t / b3 by wrapper.
        delta = (jnp.dot(w3t_ref[...], h2,
                         preferred_element_type=jnp.float32) + b3_ref[...])

        # growth zones: avg_pool3x3(alive)/9 > 0.01  <=>  window max(alpha) > 0.1
        # (masked-to-zero out-of-image taps behave like count_include_pad zeros).
        nbr_alpha = nbr_max[3:4, :]                            # (1, HW)
        zones = (nbr_alpha > 0.1).astype(jnp.float32)
        boost = zones * (0.2 * flag_ref[0].astype(jnp.float32))

        is_alpha = lax.broadcasted_iota(jnp.int32, (C, 1), 0) == 3      # (C, 1)
        new_x = x + delta + jnp.where(is_alpha, boost, 0.0)
        lower = jnp.where(is_alpha, 0.0, -1.0)                 # alpha in [0,1], rest [-1,1]
        new_x = jnp.clip(new_x, lower, 1.0)

        out_ref[...] = new_x.reshape(1, C, HW)                 # one dense 256-lane store

    return kernel


# ----------------------------------------------------------------------------
# Wrapper (NCHW in / NCHW out, like the PyTorch module)
# ----------------------------------------------------------------------------
def simple_growth_nca_forward(x_nchw, params, growth_boost=1.0):
    B, C, H, W = x_nchw.shape
    assert C >= 4, "alpha channel is hard-coded at index 3"
    HW = H * W
    HID = params["b1"].shape[-1]

    # Pixels-in-lanes state: NCHW -> (B, C, H*W) is a free reshape (no
    # transpose, no pad, no extra HBM round trips).
    x_flat = x_nchw.reshape(B, C, HW).astype(jnp.float32)

    # Whole-batch alive ratio (same batch-global semantics as the module's
    # `alive_mask.mean()` + dynamic if); passed as a scalar-prefetch 0/1 flag
    # so the kernel grid stays purely per-batch-parallel.
    alive_ratio = jnp.mean((x_flat[:, 3, :] > 0.1).astype(jnp.float32))
    flag = (alive_ratio < 0.2).astype(jnp.int32).reshape(1)

    # Fold growth_rate * growth_boost into the last layer (tiny scale).
    scale = params["growth_rate"] * jnp.float32(growth_boost)
    w1t = params["w1"].T                                   # (HID, 3C)
    b1 = params["b1"].reshape(HID, 1)
    w2t = params["w2"].T                                   # (HID, HID)
    b2 = params["b2"].reshape(HID, 1)
    w3t = (params["w3"] * scale).T                         # (C, HID)
    b3 = (params["b3"] * scale).reshape(C, 1)

    grid_spec = pltpu.PrefetchScalarGridSpec(
        num_scalar_prefetch=1,
        grid=(B,),
        in_specs=[
            pl.BlockSpec((1, C, HW), lambda b, s: (b, 0, 0)),
            pl.BlockSpec((HID, 3 * C), lambda b, s: (0, 0)),
            pl.BlockSpec((HID, 1), lambda b, s: (0, 0)),
            pl.BlockSpec((HID, HID), lambda b, s: (0, 0)),
            pl.BlockSpec((HID, 1), lambda b, s: (0, 0)),
            pl.BlockSpec((C, HID), lambda b, s: (0, 0)),
            pl.BlockSpec((C, 1), lambda b, s: (0, 0)),
        ],
        out_specs=pl.BlockSpec((1, C, HW), lambda b, s: (b, 0, 0)),
    )

    out = pl.pallas_call(
        _make_nca_kernel(H, W),
        out_shape=jax.ShapeDtypeStruct((B, C, HW), jnp.float32),
        grid_spec=grid_spec,
        # Per-step VMEM is only ~tens of KiB here, far under every
        # generation's scoped default; when H/W scale up, add a halo-aware
        # spatial grid axis and raise vmem_limit_bytes (v5e's default scoped
        # limit is the smallest, v7x has only 64 MiB physical VMEM).
        compiler_params=pltpu.CompilerParams(
            dimension_semantics=("parallel",)),
    )(flag, x_flat, w1t, b1, w2t, b2, w3t, b3)

    return out.reshape(B, C, H, W)                         # free reshape back to NCHW


# ----------------------------------------------------------------------------
# Deterministic parameter init (mirrors kaiming_normal_(a=0.3), bias=0.05)
# ----------------------------------------------------------------------------
def init_params(key, n_channels=8, hidden=32):
    def kaiming(k, fan_in, shape):
        gain = math.sqrt(2.0 / (1.0 + 0.3 ** 2))
        std = gain / math.sqrt(fan_in)
        return (std * jax.random.normal(k, shape)).astype(jnp.float32)

    k1, k2, k3 = jax.random.split(key, 3)
    c3 = 3 * n_channels
    return {
        "w1": kaiming(k1, c3, (c3, hidden)),
        "b1": jnp.full((1, hidden), 0.05, jnp.float32),
        "w2": kaiming(k2, hidden, (hidden, hidden)),
        "b2": jnp.full((1, hidden), 0.05, jnp.float32),
        "w3": kaiming(k3, hidden, (hidden, n_channels)),
        "b3": jnp.full((1, n_channels), 0.05, jnp.float32),
        "growth_rate": jnp.float32(0.3),
    }


# ----------------------------------------------------------------------------
# Pure-JAX reference (correctness check)
# ----------------------------------------------------------------------------
def reference_forward(x, params, growth_boost=1.0):
    C = x.shape[1]
    sobel_x = jnp.array([[-1, 0, 1], [-2, 0, 2], [-1, 0, 1]], jnp.float32)
    sobel_y = jnp.array([[-1, -2, -1], [0, 0, 0], [1, 2, 1]], jnp.float32)
    kx = jnp.tile(sobel_x[None, None], (C, 1, 1, 1))
    ky = jnp.tile(sobel_y[None, None], (C, 1, 1, 1))
    dn = ("NCHW", "OIHW", "NCHW")
    dxc = lax.conv_general_dilated(x, kx, (1, 1), "SAME",
                                   feature_group_count=C, dimension_numbers=dn)
    dyc = lax.conv_general_dilated(x, ky, (1, 1), "SAME",
                                   feature_group_count=C, dimension_numbers=dn)
    p = jnp.concatenate([x, dxc, dyc], axis=1)
    h = jnp.maximum(jnp.einsum("bchw,cd->bdhw", p, params["w1"])
                    + params["b1"].reshape(1, -1, 1, 1), 0.0)
    h = jnp.maximum(jnp.einsum("bchw,cd->bdhw", h, params["w2"])
                    + params["b2"].reshape(1, -1, 1, 1), 0.0)
    d = (jnp.einsum("bchw,cd->bdhw", h, params["w3"])
         + params["b3"].reshape(1, -1, 1, 1))
    d = d * params["growth_rate"] * growth_boost
    alive = (x[:, 3:4] > 0.1).astype(jnp.float32)
    ratio = jnp.mean(alive)
    ones = jnp.full((1, 1, 3, 3), 1.0 / 9.0, jnp.float32)
    neigh = lax.conv_general_dilated(alive, ones, (1, 1), "SAME",
                                     dimension_numbers=dn)
    zones = (neigh > 0.01).astype(jnp.float32)
    flag = (ratio < 0.2).astype(jnp.float32)
    d = d.at[:, 3:4].add(zones * 0.2 * flag)
    nx = jnp.clip(x + d, -1.0, 1.0)
    nx = nx.at[:, 3:4].set(jnp.clip(nx[:, 3:4], 0.0, 1.0))
    return nx


if __name__ == "__main__":
    key = jax.random.PRNGKey(0)
    k_param, k_x = jax.random.split(key)

    n_channels = 8
    B, H, W = 2, 16, 16
    params = init_params(k_param, n_channels=n_channels)
    x = jax.random.normal(k_x, (B, n_channels, H, W), dtype=jnp.float32)

    # Case 1: alive_ratio >= 0.2 (no boost, clamps exercised).
    # Case 2: mostly-dead state (alive_ratio < 0.2 -> boost path exercised).
    for xs, boost in ((x, 1.0), (0.05 * x, 1.5)):
        out = jax.block_until_ready(
            simple_growth_nca_forward(xs, params, growth_boost=boost))
        ref = jax.block_until_ready(
            reference_forward(xs, params, growth_boost=boost))
        assert out.shape == (B, n_channels, H, W)
        err = float(jnp.max(jnp.abs(out - ref)))
        assert err < 2e-3, err

    print("KERNEL_OK")
</pallas_src>

<mosaic_0001>
module attributes {stable_mosaic.version = 11 : i64} {
  func.func @kernel(%arg0: i32, %arg1: memref<1xi32, #tpu.memory_space<smem>>, %arg2: memref<1x8x256xf32, #tpu.memory_space<vmem>>, %arg3: memref<32x24xf32, #tpu.memory_space<vmem>>, %arg4: memref<32x1xf32, #tpu.memory_space<vmem>>, %arg5: memref<32x32xf32, #tpu.memory_space<vmem>>, %arg6: memref<32x1xf32, #tpu.memory_space<vmem>>, %arg7: memref<8x32xf32, #tpu.memory_space<vmem>>, %arg8: memref<8x1xf32, #tpu.memory_space<vmem>>, %arg9: memref<1x8x256xf32, #tpu.memory_space<vmem>>) attributes {dimension_semantics = [#tpu.dimension_semantics<parallel>], iteration_bounds = array<i64: 2>, scalar_prefetch = 1 : i64, scratch_operands = 0 : i64, tpu.core_type = #tpu.core_type<tc>, window_params = [{transform_indices = @transform_0, window_bounds = array<i64: 1, 8, 256>}, {pipeline_mode = #tpu.pipeline_mode<synchronous>, transform_indices = @transform_1, window_bounds = array<i64: 32, 24>}, {pipeline_mode = #tpu.pipeline_mode<synchronous>, transform_indices = @transform_2, window_bounds = array<i64: 32, 1>}, {pipeline_mode = #tpu.pipeline_mode<synchronous>, transform_indices = @transform_3, window_bounds = array<i64: 32, 32>}, {pipeline_mode = #tpu.pipeline_mode<synchronous>, transform_indices = @transform_4, window_bounds = array<i64: 32, 1>}, {pipeline_mode = #tpu.pipeline_mode<synchronous>, transform_indices = @transform_5, window_bounds = array<i64: 8, 32>}, {pipeline_mode = #tpu.pipeline_mode<synchronous>, transform_indices = @transform_6, window_bounds = array<i64: 8, 1>}, {transform_indices = @transform_7, window_bounds = array<i64: 1, 8, 256>}]} {
    %c0 = arith.constant 0 : index
    %c0_0 = arith.constant 0 : index
    %c0_1 = arith.constant 0 : index
    %0 = vector.load %arg2[%c0, %c0_0, %c0_1] : memref<1x8x256xf32, #tpu.memory_space<vmem>>, vector<1x8x256xf32>
    %1 = vector.shape_cast %0 : vector<1x8x256xf32> to vector<8x256xf32>
    %2 = tpu.iota {dimensions = array<i32: 1>} : vector<1x256xi32>
    %c15_i32 = arith.constant 15 : i32
    %3 = vector.broadcast %c15_i32 : i32 to vector<1x256xi32>
    %4 = arith.andi %2, %3 : vector<1x256xi32>
    %cst = arith.constant 0.000000e+00 : f32
    %5 = vector.broadcast %cst : f32 to vector<8x256xf32>
    %cst_2 = arith.constant 0.000000e+00 : f32
    %6 = vector.broadcast %cst_2 : f32 to vector<8x256xf32>
    %c17_i32 = arith.constant 17 : i32
    %7 = tpu.dynamic_rotate %1 by %c17_i32 dim 1 : vector<8x256xf32>, i32 -> vector<8x256xf32>
    %c16_i32 = arith.constant 16 : i32
    %8 = vector.broadcast %c16_i32 : i32 to vector<1x256xi32>
    %9 = arith.cmpi sge, %2, %8 : vector<1x256xi32>
    %c1_i32 = arith.constant 1 : i32
    %10 = vector.broadcast %c1_i32 : i32 to vector<1x256xi32>
    %11 = arith.cmpi sge, %4, %10 : vector<1x256xi32>
    %12 = arith.andi %9, %11 : vector<1x256xi1>
    %cst_3 = arith.constant 0.000000e+00 : f32
    %13 = vector.shape_cast %12 : vector<1x256xi1> to vector<1x256xi1>
    %14 = vector.broadcast %13 : vector<1x256xi1> to vector<8x256xi1>
    %15 = vector.broadcast %cst_3 : f32 to vector<8x256xf32>
    %16 = arith.select %14, %7, %15 : vector<8x256xi1>, vector<8x256xf32>
    %17 = arith.subf %5, %16 : vector<8x256xf32>
    %18 = arith.subf %6, %16 : vector<8x256xf32>
    %19 = arith.maximumf %1, %16 : vector<8x256xf32>
    %c16_i32_4 = arith.constant 16 : i32
    %20 = tpu.dynamic_rotate %1 by %c16_i32_4 dim 1 : vector<8x256xf32>, i32 -> vector<8x256xf32>
    %c16_i32_5 = arith.constant 16 : i32
    %21 = vector.broadcast %c16_i32_5 : i32 to vector<1x256xi32>
    %22 = arith.cmpi sge, %2, %21 : vector<1x256xi32>
    %cst_6 = arith.constant 0.000000e+00 : f32
    %23 = vector.shape_cast %22 : vector<1x256xi1> to vector<1x256xi1>
    %24 = vector.broadcast %23 : vector<1x256xi1> to vector<8x256xi1>
    %25 = vector.broadcast %cst_6 : f32 to vector<8x256xf32>
    %26 = arith.select %24, %20, %25 : vector<8x256xi1>, vector<8x256xf32>
    %cst_7 = arith.constant -2.000000e+00 : f32
    %27 = vector.broadcast %cst_7 : f32 to vector<8x256xf32>
    %28 = arith.mulf %27, %26 : vector<8x256xf32>
    %29 = arith.addf %18, %28 : vector<8x256xf32>
    %30 = arith.maximumf %19, %26 : vector<8x256xf32>
    %c15_i32_8 = arith.constant 15 : i32
    %31 = tpu.dynamic_rotate %1 by %c15_i32_8 dim 1 : vector<8x256xf32>, i32 -> vector<8x256xf32>
    %c16_i32_9 = arith.constant 16 : i32
    %32 = vector.broadcast %c16_i32_9 : i32 to vector<1x256xi32>
    %33 = arith.cmpi sge, %2, %32 : vector<1x256xi32>
    %c14_i32 = arith.constant 14 : i32
    %34 = vector.broadcast %c14_i32 : i32 to vector<1x256xi32>
    %35 = arith.cmpi sle, %4, %34 : vector<1x256xi32>
    %36 = arith.andi %33, %35 : vector<1x256xi1>
    %cst_10 = arith.constant 0.000000e+00 : f32
    %37 = vector.shape_cast %36 : vector<1x256xi1> to vector<1x256xi1>
    %38 = vector.broadcast %37 : vector<1x256xi1> to vector<8x256xi1>
    %39 = vector.broadcast %cst_10 : f32 to vector<8x256xf32>
    %40 = arith.select %38, %31, %39 : vector<8x256xi1>, vector<8x256xf32>
    %41 = arith.addf %17, %40 : vector<8x256xf32>
    %42 = arith.subf %29, %40 : vector<8x256xf32>
    %43 = arith.maximumf %30, %40 : vector<8x256xf32>
    %c1_i32_11 = arith.constant 1 : i32
    %44 = tpu.dynamic_rotate %1 by %c1_i32_11 dim 1 : vector<8x256xf32>, i32 -> vector<8x256xf32>
    %c1_i32_12 = arith.constant 1 : i32
    %45 = vector.broadcast %c1_i32_12 : i32 to vector<1x256xi32>
    %46 = arith.cmpi sge, %4, %45 : vector<1x256xi32>
    %cst_13 = arith.constant 0.000000e+00 : f32
    %47 = vector.shape_cast %46 : vector<1x256xi1> to vector<1x256xi1>
    %48 = vector.broadcast %47 : vector<1x256xi1> to vector<8x256xi1>
    %49 = vector.broadcast %cst_13 : f32 to vector<8x256xf32>
    %50 = arith.select %48, %44, %49 : vector<8x256xi1>, vector<8x256xf32>
    %cst_14 = arith.constant -2.000000e+00 : f32
    %51 = vector.broadcast %cst_14 : f32 to vector<8x256xf32>
    %52 = arith.mulf %51, %50 : vector<8x256xf32>
    %53 = arith.addf %41, %52 : vector<8x256xf32>
    %54 = arith.maximumf %43, %50 : vector<8x256xf32>
    %c255_i32 = arith.constant 255 : i32
    %55 = tpu.dynamic_rotate %1 by %c255_i32 dim 1 : vector<8x256xf32>, i32 -> vector<8x256xf32>
    %c14_i32_15 = arith.constant 14 : i32
    %56 = vector.broadcast %c14_i32_15 : i32 to vector<1x256xi32>
    %57 = arith.cmpi sle, %4, %56 : vector<1x256xi32>
    %cst_16 = arith.constant 0.000000e+00 : f32
    %58 = vector.shape_cast %57 : vector<1x256xi1> to vector<1x256xi1>
    %59 = vector.broadcast %58 : vector<1x256xi1> to vector<8x256xi1>
    %60 = vector.broadcast %cst_16 : f32 to vector<8x256xf32>
    %61 = arith.select %59, %55, %60 : vector<8x256xi1>, vector<8x256xf32>
    %cst_17 = arith.constant 2.000000e+00 : f32
    %62 = vector.broadcast %cst_17 : f32 to vector<8x256xf32>
    %63 = arith.mulf %62, %61 : vector<8x256xf32>
    %64 = arith.addf %53, %63 : vector<8x256xf32>
    %65 = arith.maximumf %54, %61 : vector<8x256xf32>
    %c241_i32 = arith.constant 241 : i32
    %66 = tpu.dynamic_rotate %1 by %c241_i32 dim 1 : vector<8x256xf32>, i32 -> vector<8x256xf32>
    %c240_i32 = arith.constant 240 : i32
    %67 = vector.broadcast %c240_i32 : i32 to vector<1x256xi32>
    %68 = arith.cmpi slt, %2, %67 : vector<1x256xi32>
    %c1_i32_18 = arith.constant 1 : i32
    %69 = vector.broadcast %c1_i32_18 : i32 to vector<1x256xi32>
    %70 = arith.cmpi sge, %4, %69 : vector<1x256xi32>
    %71 = arith.andi %68, %70 : vector<1x256xi1>
    %cst_19 = arith.constant 0.000000e+00 : f32
    %72 = vector.shape_cast %71 : vector<1x256xi1> to vector<1x256xi1>
    %73 = vector.broadcast %72 : vector<1x256xi1> to vector<8x256xi1>
    %74 = vector.broadcast %cst_19 : f32 to vector<8x256xf32>
    %75 = arith.select %73, %66, %74 : vector<8x256xi1>, vector<8x256xf32>
    %76 = arith.subf %64, %75 : vector<8x256xf32>
    %77 = arith.addf %42, %75 : vector<8x256xf32>
    %78 = arith.maximumf %65, %75 : vector<8x256xf32>
    %c240_i32_20 = arith.constant 240 : i32
    %79 = tpu.dynamic_rotate %1 by %c240_i32_20 dim 1 : vector<8x256xf32>, i32 -> vector<8x256xf32>
    %c240_i32_21 = arith.constant 240 : i32
    %80 = vector.broadcast %c240_i32_21 : i32 to vector<1x256xi32>
    %81 = arith.cmpi slt, %2, %80 : vector<1x256xi32>
    %cst_22 = arith.constant 0.000000e+00 : f32
    %82 = vector.shape_cast %81 : vector<1x256xi1> to vector<1x256xi1>
    %83 = vector.broadcast %82 : vector<1x256xi1> to vector<8x256xi1>
    %84 = vector.broadcast %cst_22 : f32 to vector<8x256xf32>
    %85 = arith.select %83, %79, %84 : vector<8x256xi1>, vector<8x256xf32>
    %cst_23 = arith.constant 2.000000e+00 : f32
    %86 = vector.broadcast %cst_23 : f32 to vector<8x256xf32>
    %87 = arith.mulf %86, %85 : vector<8x256xf32>
    %88 = arith.addf %77, %87 : vector<8x256xf32>
    %89 = arith.maximumf %78, %85 : vector<8x256xf32>
    %c239_i32 = arith.constant 239 : i32
    %90 = tpu.dynamic_rotate %1 by %c239_i32 dim 1 : vector<8x256xf32>, i32 -> vector<8x256xf32>
    %c240_i32_24 = arith.constant 240 : i32
    %91 = vector.broadcast %c240_i32_24 : i32 to vector<1x256xi32>
    %92 = arith.cmpi slt, %2, %91 : vector<1x256xi32>
    %c14_i32_25 = arith.constant 14 : i32
    %93 = vector.broadcast %c14_i32_25 : i32 to vector<1x256xi32>
    %94 = arith.cmpi sle, %4, %93 : vector<1x256xi32>
    %95 = arith.andi %92, %94 : vector<1x256xi1>
    %cst_26 = arith.constant 0.000000e+00 : f32
    %96 = vector.shape_cast %95 : vector<1x256xi1> to vector<1x256xi1>
    %97 = vector.broadcast %96 : vector<1x256xi1> to vector<8x256xi1>
    %98 = vector.broadcast %cst_26 : f32 to vector<8x256xf32>
    %99 = arith.select %97, %90, %98 : vector<8x256xi1>, vector<8x256xf32>
    %100 = arith.addf %76, %99 : vector<8x256xf32>
    %101 = arith.addf %88, %99 : vector<8x256xf32>
    %102 = arith.maximumf %89, %99 : vector<8x256xf32>
    %103 = tpu.concatenate %1, %100, %101 in 0 : vector<8x256xf32>, vector<8x256xf32>, vector<8x256xf32> -> vector<24x256xf32>
    %c0_27 = arith.constant 0 : index
    %c0_28 = arith.constant 0 : index
    %104 = vector.load %arg3[%c0_27, %c0_28] : memref<32x24xf32, #tpu.memory_space<vmem>>, vector<32x24xf32>
    %cst_29 = arith.constant dense<0.000000e+00> : vector<32x256xf32>
    %105 = tpu.matmul %104, %103, %cst_29 {dimension_numbers = #tpu.dot_dimension_numbers<[1], [0], [0], [1], [0, 0, 1, 1], [], []>} : vector<32x24xf32>, vector<24x256xf32>, vector<32x256xf32> -> vector<32x256xf32>
    %c0_30 = arith.constant 0 : index
    %c0_31 = arith.constant 0 : index
    %106 = vector.load %arg4[%c0_30, %c0_31] : memref<32x1xf32, #tpu.memory_space<vmem>>, vector<32x1xf32>
    %107 = vector.broadcast %106 : vector<32x1xf32> to vector<32x256xf32>
    %108 = arith.addf %105, %107 : vector<32x256xf32>
    %cst_32 = arith.constant 0.000000e+00 : f32
    %109 = vector.broadcast %cst_32 : f32 to vector<32x256xf32>
    %110 = arith.maximumf %108, %109 : vector<32x256xf32>
    %c0_33 = arith.constant 0 : index
    %c0_34 = arith.constant 0 : index
    %111 = vector.load %arg5[%c0_33, %c0_34] : memref<32x32xf32, #tpu.memory_space<vmem>>, vector<32x32xf32>
    %cst_35 = arith.constant dense<0.000000e+00> : vector<32x256xf32>
    %112 = tpu.matmul %111, %110, %cst_35 {dimension_numbers = #tpu.dot_dimension_numbers<[1], [0], [0], [1], [0, 0, 1, 1], [], []>} : vector<32x32xf32>, vector<32x256xf32>, vector<32x256xf32> -> vector<32x256xf32>
    %c0_36 = arith.constant 0 : index
    %c0_37 = arith.constant 0 : index
    %113 = vector.load %arg6[%c0_36, %c0_37] : memref<32x1xf32, #tpu.memory_space<vmem>>, vector<32x1xf32>
    %114 = vector.broadcast %113 : vector<32x1xf32> to vector<32x256xf32>
    %115 = arith.addf %112, %114 : vector<32x256xf32>
    %cst_38 = arith.constant 0.000000e+00 : f32
    %116 = vector.broadcast %cst_38 : f32 to vector<32x256xf32>
    %117 = arith.maximumf %115, %116 : vector<32x256xf32>
    %c0_39 = arith.constant 0 : index
    %c0_40 = arith.constant 0 : index
    %118 = vector.load %arg7[%c0_39, %c0_40] : memref<8x32xf32, #tpu.memory_space<vmem>>, vector<8x32xf32>
    %cst_41 = arith.constant dense<0.000000e+00> : vector<8x256xf32>
    %119 = tpu.matmul %118, %117, %cst_41 {dimension_numbers = #tpu.dot_dimension_numbers<[1], [0], [0], [1], [0, 0, 1, 1], [], []>} : vector<8x32xf32>, vector<32x256xf32>, vector<8x256xf32> -> vector<8x256xf32>
    %c0_42 = arith.constant 0 : index
    %c0_43 = arith.constant 0 : index
    %120 = vector.load %arg8[%c0_42, %c0_43] : memref<8x1xf32, #tpu.memory_space<vmem>>, vector<8x1xf32>
    %121 = vector.broadcast %120 : vector<8x1xf32> to vector<8x256xf32>
    %122 = arith.addf %119, %121 : vector<8x256xf32>
    %123 = vector.extract_strided_slice %102 {offsets = [3, 0], sizes = [1, 256], strides = [1, 1]} : vector<8x256xf32> to vector<1x256xf32>
    %cst_44 = arith.constant 1.000000e-01 : f32
    %124 = vector.broadcast %cst_44 : f32 to vector<1x256xf32>
    %125 = arith.cmpf ogt, %123, %124 : vector<1x256xf32>
    %126 = arith.extui %125 : vector<1x256xi1> to vector<1x256xi32>
    %127 = arith.sitofp %126 : vector<1x256xi32> to vector<1x256xf32>
    %c0_45 = arith.constant 0 : index
    %128 = memref.load %arg1[%c0_45] : memref<1xi32, #tpu.memory_space<smem>>
    %129 = arith.sitofp %128 : i32 to f32
    %cst_46 = arith.constant 2.000000e-01 : f32
    %130 = arith.mulf %cst_46, %129 : f32
    %131 = vector.broadcast %130 : f32 to vector<1x256xf32>
    %132 = arith.mulf %127, %131 : vector<1x256xf32>
    %133 = tpu.iota {dimensions = array<i32: 0>} : vector<8x1xi32>
    %c3_i32 = arith.constant 3 : i32
    %134 = vector.broadcast %c3_i32 : i32 to vector<8x1xi32>
    %135 = arith.cmpi eq, %133, %134 : vector<8x1xi32>
    %136 = arith.addf %1, %122 : vector<8x256xf32>
    %cst_47 = arith.constant 0.000000e+00 : f32
    %137 = vector.shape_cast %135 : vector<8x1xi1> to vector<8x1xi1>
    %138 = vector.broadcast %137 : vector<8x1xi1> to vector<8x256xi1>
    %139 = vector.shape_cast %132 : vector<1x256xf32> to vector<1x256xf32>
    %140 = vector.broadcast %139 : vector<1x256xf32> to vector<8x256xf32>
    %141 = vector.broadcast %cst_47 : f32 to vector<8x256xf32>
    %142 = arith.select %138, %140, %141 : vector<8x256xi1>, vector<8x256xf32>
    %143 = arith.addf %136, %142 : vector<8x256xf32>
    %cst_48 = arith.constant 0.000000e+00 : f32
    %cst_49 = arith.constant -1.000000e+00 : f32
    %144 = vector.broadcast %cst_48 : f32 to vector<8x1xf32>
    %145 = vector.broadcast %cst_49 : f32 to vector<8x1xf32>
    %146 = arith.select %135, %144, %145 : vector<8x1xi1>, vector<8x1xf32>
    %cst_50 = arith.constant 1.000000e+00 : f32
    %147 = vector.broadcast %146 : vector<8x1xf32> to vector<8x256xf32>
    %148 = arith.maximumf %147, %143 : vector<8x256xf32>
    %149 = vector.broadcast %cst_50 : f32 to vector<8x256xf32>
    %150 = arith.minimumf %149, %148 : vector<8x256xf32>
    %151 = vector.shape_cast %150 : vector<8x256xf32> to vector<1x8x256xf32>
    %c0_51 = arith.constant 0 : index
    %c0_52 = arith.constant 0 : index
    %c0_53 = arith.constant 0 : index
    %152 = vector.load %arg9[%c0_51, %c0_52, %c0_53] : memref<1x8x256xf32, #tpu.memory_space<vmem>>, vector<1x8x256xf32>
    tpu.vector_store %arg9[%c0_51, %c0_52, %c0_53], %151 {strides = array<i32>} : memref<1x8x256xf32, #tpu.memory_space<vmem>>, vector<1x8x256xf32>,
    return
  }
  func.func @transform_0(%arg0: i32, %arg1: memref<1xi32, #tpu.memory_space<smem>>) -> (i32, i32, i32) {
    %c0_i32 = arith.constant 0 : i32
    %c0_i32_0 = arith.constant 0 : i32
    %c0_i32_1 = arith.constant 0 : i32
    return %arg0, %c0_i32, %c0_i32_0 : i32, i32, i32
  }
  func.func @transform_1(%arg0: i32, %arg1: memref<1xi32, #tpu.memory_space<smem>>) -> (i32, i32) {
    %c0_i32 = arith.constant 0 : i32
    %c0_i32_0 = arith.constant 0 : i32
    %c0_i32_1 = arith.constant 0 : i32
    return %c0_i32, %c0_i32_0 : i32, i32
  }
  func.func @transform_2(%arg0: i32, %arg1: memref<1xi32, #tpu.memory_space<smem>>) -> (i32, i32) {
    %c0_i32 = arith.constant 0 : i32
    %c0_i32_0 = arith.constant 0 : i32
    %c0_i32_1 = arith.constant 0 : i32
    return %c0_i32, %c0_i32_0 : i32, i32
  }
  func.func @transform_3(%arg0: i32, %arg1: memref<1xi32, #tpu.memory_space<smem>>) -> (i32, i32) {
    %c0_i32 = arith.constant 0 : i32
    %c0_i32_0 = arith.constant 0 : i32
    %c0_i32_1 = arith.constant 0 : i32
    return %c0_i32, %c0_i32_0 : i32, i32
  }
  func.func @transform_4(%arg0: i32, %arg1: memref<1xi32, #tpu.memory_space<smem>>) -> (i32, i32) {
    %c0_i32 = arith.constant 0 : i32
    %c0_i32_0 = arith.constant 0 : i32
    %c0_i32_1 = arith.constant 0 : i32
    return %c0_i32, %c0_i32_0 : i32, i32
  }
  func.func @transform_5(%arg0: i32, %arg1: memref<1xi32, #tpu.memory_space<smem>>) -> (i32, i32) {
    %c0_i32 = arith.constant 0 : i32
    %c0_i32_0 = arith.constant 0 : i32
    %c0_i32_1 = arith.constant 0 : i32
    return %c0_i32, %c0_i32_0 : i32, i32
  }
  func.func @transform_6(%arg0: i32, %arg1: memref<1xi32, #tpu.memory_space<smem>>) -> (i32, i32) {
    %c0_i32 = arith.constant 0 : i32
    %c0_i32_0 = arith.constant 0 : i32
    %c0_i32_1 = arith.constant 0 : i32
    return %c0_i32, %c0_i32_0 : i32, i32
  }
  func.func @transform_7(%arg0: i32, %arg1: memref<1xi32, #tpu.memory_space<smem>>) -> (i32, i32, i32) {
    %c0_i32 = arith.constant 0 : i32
    %c0_i32_0 = arith.constant 0 : i32
    %c0_i32_1 = arith.constant 0 : i32
    return %arg0, %c0_i32, %c0_i32_0 : i32, i32, i32
  }
}

</mosaic_0001>

<llo_original>
// kernel: tpu_custom_call.1
$region0: #{tpu_custom_call.1}
  #allocation0 [shape = 'u32[]', space=smem, size = 0x4, offset = 0x4, fixed_abs, tag = 'smem constant byte address 0x4 - core index']
  #allocation1 [shape = 'u32[144,128]{1,0:T(1,128)}', space=vmem, size = 0x12000, scoped, tag = 'internal scratch']
  #allocation2 [shape = 's32[1]{0}', space=sflag, size = 0x4, scoped, tag = 'scoped memory for tpu_custom_call.1']
  #allocation3 [shape = 's32[1]{0:T(128)S(6)}', space=smem, size = 0x200, scoped, tag = 'prefetched SMEM operand 0']
  %s0 = inlined_call_operand.<no memory space> [shape: s32[1], index: 0, kind: input, shape index: {}]
  %s1 = inlined_call_operand.vmem [shape: f32[2,8,256], index: 1, kind: input, shape index: {}]
  %s2 = inlined_call_operand.vmem [shape: f32[32,24], index: 2, kind: input, shape index: {}]
  %s3 = inlined_call_operand.vmem [shape: f32[32,1], index: 3, kind: input, shape index: {}]
  %s4 = inlined_call_operand.vmem [shape: f32[32,32], index: 4, kind: input, shape index: {}]
  %s5 = inlined_call_operand.vmem [shape: f32[32,1], index: 5, kind: input, shape index: {}]
  %s6 = inlined_call_operand.vmem [shape: f32[8,32], index: 6, kind: input, shape index: {}]
  %s7 = inlined_call_operand.vmem [shape: f32[8,1], index: 7, kind: input, shape index: {}]
  %s8 = inlined_call_operand.hbm [shape: f32[2,8,256], index: 8, kind: output, shape index: {}]
  %s9 = sld [smem:[#allocation0]]
  $region61: #{tpu_custom_call.1} parent=0
    _
  %s11 = ssub.s32 1, %s9
  %s12 = scalar_select 0, %s11, %s9
  %13 = sst [smem:[#allocation3]] %s0
  $region1: #{tpu_custom_call.1} parent=0
    #allocation4 [shape = 'u8[16384]{0}', space=vmem, size = 0x4000, scoped, tag = 'output window, operand 0']
    #allocation5 [shape = 's32[2]{0}', space=sflag, size = 0x8, scoped, tag = 'scoped memory for tpu_custom_call.1']
    %14 = vsyncpa [#allocation5], 0
    %s15 = scalar_lea.sflag [#allocation5], 1
    %16 = vsyncpa %s15, 0
    loop: start=0, step=1, limit=4
    $region2: #{tpu_custom_call.1} parent=1 // loop_pre_header
      _
    $region3: #{tpu_custom_call.1} parent=1 // loop_header
      %s18 = sphi 0, %s22
      %p19 = scmp.ge.s32.totalorder %s18, 4
      %s28 = sphi 0, %s30
      %s31 = sphi 0, %s28
      %s32 = sphi 0, %s31
      %s48 = sphi 0, %s32
      %s52 = sphi 0, %s52
      %s54 = sphi 0, %s52
      %s55 = sphi 0, %s54
      %s69 = sphi 0, %s55
      %s73 = sphi 0, %s73
      %s75 = sphi 0, %s73
      %s76 = sphi 0, %s75
      %s90 = sphi 0, %s76
      %s94 = sphi 0, %s94
      %s96 = sphi 0, %s94
      %s97 = sphi 0, %s96
      %s111 = sphi 0, %s97
      %s115 = sphi 0, %s115
      %s117 = sphi 0, %s115
      %s118 = sphi 0, %s117
      %s132 = sphi 0, %s118
      %s136 = sphi 0, %s136
      %s138 = sphi 0, %s136
      %s139 = sphi 0, %s138
      %s153 = sphi 0, %s139
      %s157 = sphi 0, %s157
      %s159 = sphi 0, %s157
      %s160 = sphi 0, %s159
      %s174 = sphi 0, %s160
      %s180 = sphi 0, %s182
      %s183 = sphi 0, %s180
      %s184 = sphi 0, %s183
      %s200 = sphi 0, %s184
    $region4: #{tpu_custom_call.1} parent=1 // loop_header_branch
      %21 = sbr.rel (%p19) target = $region8
    $region5: #{tpu_custom_call.1} parent=1 // loop_body
      %s23 = ssub.s32 %s18, 1
      %s24 = ssub.s32 %s18, 2
      %s25 = sadd.s32 %s18, 1
      %s26 = ssub.s32 %s18, %s25
      %p27 = scmp.eq.s32.totalorder %s26, 0
      %s29 = sadd.s32 %s28, 1
      %s30 = scalar_select %p27, %s28, %s29
      %p33 = pneg %p27
      %p34 = scmp.eq.s32.totalorder %s18, 1
      %p35 = por %p33, %p34
      %p36 = scmp.ne.s32.totalorder %s28, %s31
      %p37 = scmp.eq.s32.totalorder %s18, 0
      %p38 = por %p36, %p37
      %p39 = scmp.ne.s32.totalorder %s28, %s31
      %p40 = scmp.eq.s32.totalorder %s23, 1
      %p41 = por %p39, %p40
      %p42 = scmp.ne.s32.totalorder %s31, %s32
      %p43 = scmp.eq.s32.totalorder %s23, 0
      %p44 = por %p42, %p43
      %p45 = scmp.ne.s32.totalorder %s31, %s32
      %p46 = scmp.eq.s32.totalorder %s24, 1
      %p47 = por %p45, %p46
      %p49 = scmp.ne.s32.totalorder %s32, %s48
      %p50 = scmp.eq.s32.totalorder %s24, 0
      %p51 = por %p49, %p50
      %s53 = sadd.s32 %s52, 1
      %p56 = scmp.eq.s32.totalorder %s18, 1
      %p57 = scmp.ne.s32.totalorder %s52, %s54
      %p58 = scmp.eq.s32.totalorder %s18, 0
      %p59 = por %p57, %p58
      %p60 = scmp.ne.s32.totalorder %s52, %s54
      %p61 = scmp.eq.s32.totalorder %s23, 1
      %p62 = por %p60, %p61
      %p63 = scmp.ne.s32.totalorder %s54, %s55
      %p64 = scmp.eq.s32.totalorder %s23, 0
      %p65 = por %p63, %p64
      %p66 = scmp.ne.s32.totalorder %s54, %s55
      %p67 = scmp.eq.s32.totalorder %s24, 1
      %p68 = por %p66, %p67
      %p70 = scmp.ne.s32.totalorder %s55, %s69
      %p71 = scmp.eq.s32.totalorder %s24, 0
      %p72 = por %p70, %p71
      %s74 = sadd.s32 %s73, 1
      %p77 = scmp.eq.s32.totalorder %s18, 1
      %p78 = scmp.ne.s32.totalorder %s73, %s75
      %p79 = scmp.eq.s32.totalorder %s18, 0
      %p80 = por %p78, %p79
      %p81 = scmp.ne.s32.totalorder %s73, %s75
      %p82 = scmp.eq.s32.totalorder %s23, 1
      %p83 = por %p81, %p82
      %p84 = scmp.ne.s32.totalorder %s75, %s76
      %p85 = scmp.eq.s32.totalorder %s23, 0
      %p86 = por %p84, %p85
      %p87 = scmp.ne.s32.totalorder %s75, %s76
      %p88 = scmp.eq.s32.totalorder %s24, 1
      %p89 = por %p87, %p88
      %p91 = scmp.ne.s32.totalorder %s76, %s90
      %p92 = scmp.eq.s32.totalorder %s24, 0
      %p93 = por %p91, %p92
      %s95 = sadd.s32 %s94, 1
      %p98 = scmp.eq.s32.totalorder %s18, 1
      %p99 = scmp.ne.s32.totalorder %s94, %s96
      %p100 = scmp.eq.s32.totalorder %s18, 0
      %p101 = por %p99, %p100
      %p102 = scmp.ne.s32.totalorder %s94, %s96
      %p103 = scmp.eq.s32.totalorder %s23, 1
      %p104 = por %p102, %p103
      %p105 = scmp.ne.s32.totalorder %s96, %s97
      %p106 = scmp.eq.s32.totalorder %s23, 0
      %p107 = por %p105, %p106
      %p108 = scmp.ne.s32.totalorder %s96, %s97
      %p109 = scmp.eq.s32.totalorder %s24, 1
      %p110 = por %p108, %p109
      %p112 = scmp.ne.s32.totalorder %s97, %s111
      %p113 = scmp.eq.s32.totalorder %s24, 0
      %p114 = por %p112, %p113
      %s116 = sadd.s32 %s115, 1
      %p119 = scmp.eq.s32.totalorder %s18, 1
      %p120 = scmp.ne.s32.totalorder %s115, %s117
      %p121 = scmp.eq.s32.totalorder %s18, 0
      %p122 = por %p120, %p121
      %p123 = scmp.ne.s32.totalorder %s115, %s117
      %p124 = scmp.eq.s32.totalorder %s23, 1
      %p125 = por %p123, %p124
      %p126 = scmp.ne.s32.totalorder %s117, %s118
      %p127 = scmp.eq.s32.totalorder %s23, 0
      %p128 = por %p126, %p127
      %p129 = scmp.ne.s32.totalorder %s117, %s118
      %p130 = scmp.eq.s32.totalorder %s24, 1
      %p131 = por %p129, %p130
      %p133 = scmp.ne.s32.totalorder %s118, %s132
      %p134 = scmp.eq.s32.totalorder %s24, 0
      %p135 = por %p133, %p134
      %s137 = sadd.s32 %s136, 1
      %p140 = scmp.eq.s32.totalorder %s18, 1
      %p141 = scmp.ne.s32.totalorder %s136, %s138
      %p142 = scmp.eq.s32.totalorder %s18, 0
      %p143 = por %p141, %p142
      %p144 = scmp.ne.s32.totalorder %s136, %s138
      %p145 = scmp.eq.s32.totalorder %s23, 1
      %p146 = por %p144, %p145
      %p147 = scmp.ne.s32.totalorder %s138, %s139
      %p148 = scmp.eq.s32.totalorder %s23, 0
      %p149 = por %p147, %p148
      %p150 = scmp.ne.s32.totalorder %s138, %s139
      %p151 = scmp.eq.s32.totalorder %s24, 1
      %p152 = por %p150, %p151
      %p154 = scmp.ne.s32.totalorder %s139, %s153
      %p155 = scmp.eq.s32.totalorder %s24, 0
      %p156 = por %p154, %p155
      %s158 = sadd.s32 %s157, 1
      %p161 = scmp.eq.s32.totalorder %s18, 1
      %p162 = scmp.ne.s32.totalorder %s157, %s159
      %p163 = scmp.eq.s32.totalorder %s18, 0
      %p164 = por %p162, %p163
      %p165 = scmp.ne.s32.totalorder %s157, %s159
      %p166 = scmp.eq.s32.totalorder %s23, 1
      %p167 = por %p165, %p166
      %p168 = scmp.ne.s32.totalorder %s159, %s160
      %p169 = scmp.eq.s32.totalorder %s23, 0
      %p170 = por %p168, %p169
      %p171 = scmp.ne.s32.totalorder %s159, %s160
      %p172 = scmp.eq.s32.totalorder %s24, 1
      %p173 = por %p171, %p172
      %p175 = scmp.ne.s32.totalorder %s160, %s174
      %p176 = scmp.eq.s32.totalorder %s24, 0
      %p177 = por %p175, %p176
      %s178 = ssub.s32 %s18, %s25
      %p179 = scmp.eq.s32.totalorder %s178, 0
      %s181 = sadd.s32 %s180, 1
      %s182 = scalar_select %p179, %s180, %s181
      %p185 = pneg %p179
      %p186 = scmp.eq.s32.totalorder %s18, 1
      %p187 = por %p185, %p186
      %p188 = scmp.ne.s32.totalorder %s180, %s183
      %p189 = scmp.eq.s32.totalorder %s18, 0
      %p190 = por %p188, %p189
      %p191 = scmp.ne.s32.totalorder %s180, %s183
      %p192 = scmp.eq.s32.totalorder %s23, 1
      %p193 = por %p191, %p192
      %p194 = scmp.ne.s32.totalorder %s183, %s184
      %p195 = scmp.eq.s32.totalorder %s23, 0
      %p196 = por %p194, %p195
      %p197 = scmp.ne.s32.totalorder %s183, %s184
      %p198 = scmp.eq.s32.totalorder %s24, 1
      %p199 = por %p197, %p198
      %p201 = scmp.ne.s32.totalorder %s184, %s200
      %p202 = scmp.eq.s32.totalorder %s24, 0
      %p203 = por %p201, %p202
      %p204 = scmp.le.s32.totalorder 1, %s18
      %p205 = scmp.lt.s32.totalorder %s18, 3
      %p206 = pnand %p204, %p205
      %p207 = pneg %p206
      // Predicated region
      $region9: #{tpu_custom_call.1} parent=5 // pred_check
        _
      $region10: #{tpu_custom_call.1} parent=5 // pred_check_branch
        %209 = sbr.rel (%p206) target = $region12
      $region11: #{tpu_custom_call.1} parent=5 // pred_region
        %s210 = ssub.s32 %s18, 1
        // Predicated region
        $region13: #{tpu_custom_call.1} parent=11 // pred_check
          %p211 = pneg %p65
        $region14: #{tpu_custom_call.1} parent=11 // pred_check_branch
          %213 = sbr.rel (%p211) target = $region16
        $region15: #{tpu_custom_call.1} parent=11 // pred_region
          _
        $region16: #{tpu_custom_call.1} parent=11 // pred_fallthru
          _
        // Predicated region
        $region17: #{tpu_custom_call.1} parent=11 // pred_check
          %p214 = pneg %p86
        $region18: #{tpu_custom_call.1} parent=11 // pred_check_branch
          %216 = sbr.rel (%p214) target = $region20
        $region19: #{tpu_custom_call.1} parent=11 // pred_region
          _
        $region20: #{tpu_custom_call.1} parent=11 // pred_fallthru
          _
        // Predicated region
        $region21: #{tpu_custom_call.1} parent=11 // pred_check
          %p217 = pneg %p107
        $region22: #{tpu_custom_call.1} parent=11 // pred_check_branch
          %219 = sbr.rel (%p217) target = $region24
        $region23: #{tpu_custom_call.1} parent=11 // pred_region
          _
        $region24: #{tpu_custom_call.1} parent=11 // pred_fallthru
          _
        // Predicated region
        $region25: #{tpu_custom_call.1} parent=11 // pred_check
          %p220 = pneg %p128
        $region26: #{tpu_custom_call.1} parent=11 // pred_check_branch
          %222 = sbr.rel (%p220) target = $region28
        $region27: #{tpu_custom_call.1} parent=11 // pred_region
          _
        $region28: #{tpu_custom_call.1} parent=11 // pred_fallthru
          _
        // Predicated region
        $region29: #{tpu_custom_call.1} parent=11 // pred_check
          %p223 = pneg %p149
        $region30: #{tpu_custom_call.1} parent=11 // pred_check_branch
          %225 = sbr.rel (%p223) target = $region32
        $region31: #{tpu_custom_call.1} parent=11 // pred_region
          _
        $region32: #{tpu_custom_call.1} parent=11 // pred_fallthru
          _
        // Predicated region
        $region33: #{tpu_custom_call.1} parent=11 // pred_check
          %p226 = pneg %p170
        $region34: #{tpu_custom_call.1} parent=11 // pred_check_branch
          %228 = sbr.rel (%p226) target = $region36
        $region35: #{tpu_custom_call.1} parent=11 // pred_region
          _
        $region36: #{tpu_custom_call.1} parent=11 // pred_fallthru
          _
      $region12: #{tpu_custom_call.1} parent=5 // pred_fallthru
        _
      %p229 = scmp.lt.s32.totalorder %s18, 2
      // Predicated region
      $region37: #{tpu_custom_call.1} parent=5 // pred_check
        %p230 = pneg %p229
      $region38: #{tpu_custom_call.1} parent=5 // pred_check_branch
        %232 = sbr.rel (%p230) target = $region40
      $region39: #{tpu_custom_call.1} parent=5 // pred_region
        // Predicated region
        $region41: #{tpu_custom_call.1} parent=39 // pred_check
          %p233 = pneg %p38
        $region42: #{tpu_custom_call.1} parent=39 // pred_check_branch
          %235 = sbr.rel (%p233) target = $region44
        $region43: #{tpu_custom_call.1} parent=39 // pred_region
          %p236 = scmp.lt.s32.totalorder %s18, 1
          %s237 = scalar_select %p236, %s18, 1
          %s238 = smul.addr %s237, 2
          %s239 = smul.addr %s238, 8
          %s240 = scalar_lea.vmem %s1, %s239
        $region44: #{tpu_custom_call.1} parent=39 // pred_fallthru
          _
      $region40: #{tpu_custom_call.1} parent=5 // pred_fallthru
        _
      %p241 = scmp.le.s32.totalorder 1, %s18
      %p242 = scmp.lt.s32.totalorder %s18, 3
      %p243 = pnand %p241, %p242
      %p244 = pneg %p243
      // Predicated region
      $region45: #{tpu_custom_call.1} parent=5 // pred_check
        _
      $region46: #{tpu_custom_call.1} parent=5 // pred_check_branch
        %246 = sbr.rel (%p243) target = $region48
      $region47: #{tpu_custom_call.1} parent=5 // pred_region
        %s247 = ssub.s32 %s18, 1
        %p248 = scmp.lt.s32.totalorder %s23, 1
        %s249 = scalar_select %p248, %s23, 1
        %s250 = smul.addr %s249, 2
        %s251 = smul.addr %s250, 8
        %s252 = scalar_lea.vmem %s1, %s251
        %p253 = pneg %p44
        %p254 = pneg %p41
        %p255 = pneg %p65
        %p256 = pneg %p62
        %p257 = pneg %p86
        %p258 = pneg %p83
        %p259 = pneg %p107
        %p260 = pneg %p104
        %p261 = pneg %p128
        %p262 = pneg %p125
        %p263 = pneg %p149
        %p264 = pneg %p146
        %p265 = pneg %p170
        %p266 = pneg %p167
        %p267 = pneg %p196
        %p268 = pneg %p193
        %s269 = sand.u32 %s183, 1
        %s270 = scalar_lea.sflag [#allocation5], %s269
        %s271 = sand.u32 %s183, 1
        %s272 = smul.addr %s271, 16
        %s273 = scalar_lea.vmem [#allocation4], %s272
        %p274 = scmp.lt.s32.totalorder %s23, 1
        %s275 = scalar_select %p274, %s23, 1
        %s276 = smul.addr %s275, 2
        %s277 = smul.addr %s276, 8
        %s278 = scalar_lea.vmem %s1, %s277
        %v279 = vld [vmem:[%s278] sm:$0xff]
        %v280 = vld [vmem:[%s278 + $0x8] sm:$0xff]
        %v281 = vlaneseq
        %v282 = vand.u32 %v281, 127
        %v283 = vadd.s32 %v282, 128
        %v284 = vand.u32 %v282, 15
        %v285 = vand.u32 %v283, 15
        %286 = vrot.lane.b32.xlu0 %v279, 17
        %v287 = vpop.permute.xlu0 %286
        %288 = vrot.lane.b32.xlu0 %v280, 17
        %v289 = vpop.permute.xlu0 %288
        %vm290 = vcmp.lt.s32.totalorder %v282, 17
        %v291 = vsel %vm290, %v287, %v289
        %v292 = vsel %vm290, %v289, %v287
        %vm293 = vcmp.ge.s32.totalorder %v282, 16
        %vm294 = vcmp.ge.s32.totalorder %v283, 16
        %vm295 = vcmp.ge.s32.totalorder %v284, 1
        %vm296 = vcmp.ge.s32.totalorder %v285, 1
        %vm297 = vmand %vm293, %vm295
        %vm298 = vmand %vm294, %vm296
        %v299 = vsel %vm297, 1, 0
        %v300 = vsel %vm298, 1, 0
        %vm301 = vcmp.eq.s32.totalorder %v299, 1
        %vm302 = vcmp.eq.s32.totalorder %v300, 1
        %v303 = vsel %vm301, %v292, 0.0
        %v304 = vsel %vm302, %v291, 0.0
        %v305 = vsub.f32 0.0, %v303
        %v306 = vsub.f32 0.0, %v304
        %v307 = vmax.f32 %v279, %v303
        %v308 = vmax.f32 %v280, %v304
        %309 = vrot.lane.b32.xlu0 %v279, 16
        %v310 = vpop.permute.xlu0 %309
        %311 = vrot.lane.b32.xlu0 %v280, 16
        %v312 = vpop.permute.xlu0 %311
        %vm313 = vcmp.lt.s32.totalorder %v282, 16
        %v314 = vsel %vm313, %v310, %v312
        %v315 = vsel %vm313, %v312, %v310
        %v316 = vsel %vm293, 1, 0
        %v317 = vsel %vm294, 1, 0
        %vm318 = vcmp.eq.s32.totalorder %v316, 1
        %vm319 = vcmp.eq.s32.totalorder %v317, 1
        %v320 = vsel %vm318, %v315, 0.0
        %v321 = vsel %vm319, %v314, 0.0
        %v322 = vmul.f32 %v320, -2.0
        %v323 = vmul.f32 %v321, -2.0
        %v324 = vadd.f32 %v305, %v322
        %v325 = vadd.f32 %v306, %v323
        %v326 = vmax.f32 %v307, %v320
        %v327 = vmax.f32 %v308, %v321
        %328 = vrot.lane.b32.xlu0 %v279, 15
        %v329 = vpop.permute.xlu0 %328
        %330 = vrot.lane.b32.xlu0 %v280, 15
        %v331 = vpop.permute.xlu0 %330
        %vm332 = vcmp.lt.s32.totalorder %v282, 15
        %v333 = vsel %vm332, %v329, %v331
        %v334 = vsel %vm332, %v331, %v329
        %vm335 = vcmp.le.s32.totalorder %v284, 14
        %vm336 = vcmp.le.s32.totalorder %v285, 14
        %vm337 = vmand %vm293, %vm335
        %vm338 = vmand %vm294, %vm336
        %v339 = vsel %vm337, 1, 0
        %v340 = vsel %vm338, 1, 0
        %vm341 = vcmp.eq.s32.totalorder %v339, 1
        %vm342 = vcmp.eq.s32.totalorder %v340, 1
        %v343 = vsel %vm341, %v334, 0.0
        %v344 = vsel %vm342, %v333, 0.0
        %v345 = vadd.f32 %v305, %v343
        %v346 = vadd.f32 %v306, %v344
        %v347 = vsub.f32 %v324, %v343
        %v348 = vsub.f32 %v325, %v344
        %v349 = vmax.f32 %v326, %v343
        %v350 = vmax.f32 %v327, %v344
        %351 = vrot.lane.b32.xlu0 %v279, 1
        %v352 = vpop.permute.xlu0 %351
        %353 = vrot.lane.b32.xlu0 %v280, 1
        %v354 = vpop.permute.xlu0 %353
        %vm355 = vcmp.lt.s32.totalorder %v282, 1
        %v356 = vsel %vm355, %v352, %v354
        %v357 = vsel %vm355, %v354, %v352
        %v358 = vsel %vm295, 1, 0
        %v359 = vsel %vm296, 1, 0
        %vm360 = vcmp.eq.s32.totalorder %v358, 1
        %vm361 = vcmp.eq.s32.totalorder %v359, 1
        %v362 = vsel %vm360, %v357, 0.0
        %v363 = vsel %vm361, %v356, 0.0
        %v364 = vmul.f32 %v362, -2.0
        %v365 = vmul.f32 %v363, -2.0
        %v366 = vadd.f32 %v345, %v364
        %v367 = vadd.f32 %v346, %v365
        %v368 = vmax.f32 %v349, %v362
        %v369 = vmax.f32 %v350, %v363
        %370 = vrot.lane.b32.xlu0 %v279, 127
        %v371 = vpop.permute.xlu0 %370
        %372 = vrot.lane.b32.xlu0 %v280, 127
        %v373 = vpop.permute.xlu0 %372
        %vm374 = vcmp.lt.s32.totalorder %v282, 127
        %v375 = vsel %vm374, %v371, %v373
        %v376 = vsel %vm374, %v373, %v371
        %v377 = vsel %vm335, 1, 0
        %v378 = vsel %vm336, 1, 0
        %vm379 = vcmp.eq.s32.totalorder %v377, 1
        %vm380 = vcmp.eq.s32.totalorder %v378, 1
        %v381 = vsel %vm379, %v375, 0.0
        %v382 = vsel %vm380, %v376, 0.0
        %v383 = vmul.f32 %v381, 2.0
        %v384 = vmul.f32 %v382, 2.0
        %v385 = vadd.f32 %v366, %v383
        %v386 = vadd.f32 %v367, %v384
        %v387 = vmax.f32 %v368, %v381
        %v388 = vmax.f32 %v369, %v382
        %389 = vrot.lane.b32.xlu0 %v279, 113
        %v390 = vpop.permute.xlu0 %389
        %391 = vrot.lane.b32.xlu0 %v280, 113
        %v392 = vpop.permute.xlu0 %391
        %vm393 = vcmp.lt.s32.totalorder %v282, 113
        %v394 = vsel %vm393, %v390, %v392
        %v395 = vsel %vm393, %v392, %v390
        %vm396 = vcmp.lt.s32.totalorder %v282, 240
        %vm397 = vcmp.lt.s32.totalorder %v283, 240
        %vm398 = vmand %vm396, %vm295
        %vm399 = vmand %vm397, %vm296
        %v400 = vsel %vm398, 1, 0
        %v401 = vsel %vm399, 1, 0
        %vm402 = vcmp.eq.s32.totalorder %v400, 1
        %vm403 = vcmp.eq.s32.totalorder %v401, 1
        %v404 = vsel %vm402, %v394, 0.0
        %v405 = vsel %vm403, %v395, 0.0
        %v406 = vsub.f32 %v385, %v404
        %v407 = vsub.f32 %v386, %v405
        %v408 = vadd.f32 %v347, %v404
        %v409 = vadd.f32 %v348, %v405
        %v410 = vmax.f32 %v387, %v404
        %v411 = vmax.f32 %v388, %v405
        %412 = vrot.lane.b32.xlu0 %v279, 112
        %v413 = vpop.permute.xlu0 %412
        %414 = vrot.lane.b32.xlu0 %v280, 112
        %v415 = vpop.permute.xlu0 %414
        %vm416 = vcmp.lt.s32.totalorder %v282, 112
        %v417 = vsel %vm416, %v413, %v415
        %v418 = vsel %vm416, %v415, %v413
        %v419 = vsel %vm396, 1, 0
        %v420 = vsel %vm397, 1, 0
        %vm421 = vcmp.eq.s32.totalorder %v419, 1
        %vm422 = vcmp.eq.s32.totalorder %v420, 1
        %v423 = vsel %vm421, %v417, 0.0
        %v424 = vsel %vm422, %v418, 0.0
        %v425 = vmul.f32 %v423, 2.0
        %v426 = vmul.f32 %v424, 2.0
        %v427 = vadd.f32 %v408, %v425
        %v428 = vadd.f32 %v409, %v426
        %v429 = vmax.f32 %v410, %v423
        %v430 = vmax.f32 %v411, %v424
        %431 = vrot.lane.b32.xlu0 %v279, 111
        %v432 = vpop.permute.xlu0 %431
        %433 = vrot.lane.b32.xlu0 %v280, 111
        %v434 = vpop.permute.xlu0 %433
        %vm435 = vcmp.lt.s32.totalorder %v282, 111
        %v436 = vsel %vm435, %v432, %v434
        %v437 = vsel %vm435, %v434, %v432
        %vm438 = vmand %vm396, %vm335
        %vm439 = vmand %vm397, %vm336
        %v440 = vsel %vm438, 1, 0
        %v441 = vsel %vm439, 1, 0
        %vm442 = vcmp.eq.s32.totalorder %v440, 1
        %vm443 = vcmp.eq.s32.totalorder %v441, 1
        %v444 = vsel %vm442, %v436, 0.0
        %v445 = vsel %vm443, %v437, 0.0
        %v446 = vadd.f32 %v406, %v444
        %v447 = vadd.f32 %v407, %v445
        %v448 = vadd.f32 %v427, %v444
        %v449 = vadd.f32 %v428, %v445
        %v450 = vmax.f32 %v429, %v444
        %v451 = vmax.f32 %v430, %v445
        %v452 = vld [vmem:[%s2] sm:$0xff]
        %v453 = vld [vmem:[%s2 + $0x8] sm:$0xff]
        %v454 = vld [vmem:[%s2 + $0x10] sm:$0xff]
        %v455 = vld [vmem:[%s2 + $0x18] sm:$0xff]
        %v456 = vld [vmem:[%s3] sm:$0xff]
        %v457 = vld [vmem:[%s3 + $0x8] sm:$0xff]
        %v458 = vld [vmem:[%s3 + $0x10] sm:$0xff]
        %v459 = vld [vmem:[%s3 + $0x18] sm:$0xff]
        %461 = vset.pattern.permute.xlu0 0
        %462 = vperm.xlu0 %461, %v456
        %v463 = vpop.permute.xlu0 %462
        %466 = vset.pattern.permute.xlu0 0
        %467 = vperm.xlu0 %466, %v457
        %v468 = vpop.permute.xlu0 %467
        %471 = vset.pattern.permute.xlu0 0
        %472 = vperm.xlu0 %471, %v458
        %v473 = vpop.permute.xlu0 %472
        %476 = vset.pattern.permute.xlu0 0
        %477 = vperm.xlu0 %476, %v459
        %v478 = vpop.permute.xlu0 %477
        %vm480 = vcmask 195584
        %v482 = vsel %vm480, %v452, 0
        %v485 = vsel %vm480, %v453, 0
        %v488 = vsel %vm480, %v454, 0
        %v491 = vsel %vm480, %v455, 0
        %493 = vmatprep.subr.mxu0 %v280
        %494 = vmatpush1.msra.mxu0 %v279
        %495 = vmatprep.subr.mxu0 %v447
        %496 = vmatpush1.msra.mxu0 %v446
        %497 = vmatprep.subr.mxu0 %v449
        %498 = vmatpush1.msra.mxu0 %v448
        %499 = vmatprep.subr.mxu0 0.0
        %500 = vmatpush1.msra.mxu0 0.0
        %501 = vmatprep.subr.mxu0 0.0
        %502 = vmatpush1.msra.mxu0 0.0
        %503 = vmatprep.subr.mxu0 0.0
        %504 = vmatpush1.msra.mxu0 0.0
        %505 = vmatprep.subr.mxu0 0.0
        %506 = vmatpush1.msra.mxu0 0.0
        %507 = vmatprep.subr.mxu0 0.0
        %508 = vmatpush1.msra.mxu0 0.0
        %509 = vmatprep.subr.mxu0 0.0
        %510 = vmatpush1.msra.mxu0 0.0
        %511 = vmatprep.subr.mxu0 0.0
        %512 = vmatpush1.msra.mxu0 0.0
        %513 = vmatprep.subr.mxu0 0.0
        %514 = vmatpush1.msra.mxu0 0.0
        %515 = vmatprep.subr.mxu0 0.0
        %516 = vmatpush1.msra.mxu0 0.0
        %517 = vmatprep.subr.mxu0 0.0
        %518 = vmatpush1.msra.mxu0 0.0
        %519 = vmatprep.subr.mxu0 0.0
        %520 = vmatpush1.msra.mxu0 0.0
        %521 = vmatprep.subr.mxu0 0.0
        %522 = vmatpush1.msra.mxu0 0.0
        %523 = vmatprep.subr.mxu0 0.0
        %524 = vmatpush1.msra.mxu0 0.0
        %525 = vmatprep.subr.mxu0 0.0
        %526 = vmatpush1.msra.mxu0 0.0
        %527 = vmatprep.subr.mxu0 0.0
        %528 = vmatpush1.msra.mxu0 0.0
        %529 = vmatprep.subr.mxu0 0.0
        %530 = vmatpush1.msra.mxu0 0.0
        %531 = vmatprep.subr.mxu0 0.0
        %532 = vmatpush1.msra.mxu0 0.0
        %533 = vmatprep.subr.mxu0 0.0
        %534 = vmatpush1.msra.mxu0 0.0
        %535 = vmatprep.subr.mxu0 0.0
        %536 = vmatpush1.msra.mxu0 0.0
        %537 = vmatprep.subr.mxu0 0.0
        %538 = vmatpush1.msra.mxu0 0.0
        %539 = vmatprep.subr.mxu0 0.0
        %540 = vmatpush1.msra.mxu0 0.0
        %541 = vmatprep.subr.mxu0 0.0
        %542 = vmatpush1.msra.mxu0 0.0
        %543 = vmatprep.subr.mxu0 0.0
        %544 = vmatpush1.msra.mxu0 0.0
        %545 = vmatprep.subr.mxu0 0.0
        %546 = vmatpush1.msra.mxu0 0.0
        %547 = vmatprep.subr.mxu0 0.0
        %548 = vmatpush1.msra.mxu0 0.0
        %549 = vmatprep.subr.mxu0 0.0
        %550 = vmatpush1.msra.mxu0 0.0
        %551 = vmatprep.subr.mxu0 0.0
        %552 = vmatpush1.msra.mxu0 0.0
        %553 = vmatprep.subr.mxu0 0.0
        %554 = vmatpush1.msra.mxu0 0.0
        %555 = vmatprep.subr.mxu0 0.0
        %556 = vmatpush1.msra.mxu0 0.0
        %557 = vmatprep.mubr.f32.mxu0 0.0
        %558 = vmatmul.mubr.f32.gmra.mrb[0].mxu0 %v482
        %v559 = vpop.f32.mrb[0].mxu0
        %v560 = vadd.f32 %v463, %v559
        %v561 = vpop.f32.mrb[0].mxu0
        %v562 = vadd.f32 %v463, %v561
        %563 = vmatprep.mubr.f32.mxu0 0.0
        %564 = vmatmul.mubr.f32.gmra.mrb[0].mxu0 %v485
        %v565 = vpop.f32.mrb[0].mxu0
        %v566 = vadd.f32 %v468, %v565
        %v567 = vpop.f32.mrb[0].mxu0
        %v568 = vadd.f32 %v468, %v567
        %569 = vmatprep.mubr.f32.mxu0 0.0
        %570 = vmatmul.mubr.f32.gmra.mrb[0].mxu0 %v488
        %v571 = vpop.f32.mrb[0].mxu0
        %v572 = vadd.f32 %v473, %v571
        %v573 = vpop.f32.mrb[0].mxu0
        %v574 = vadd.f32 %v473, %v573
        %575 = vmatprep.mubr.f32.mxu0 0.0
        %576 = vmatmul.mubr.f32.gmra.mrb[0].mxu0 %v491
        %v577 = vpop.f32.mrb[0].mxu0
        %v578 = vadd.f32 %v478, %v577
        %v579 = vpop.f32.mrb[0].mxu0
        %v580 = vadd.f32 %v478, %v579
        %581 = vdwg.mxu0
        %v582 = vmax.f32 %v560, 0.0
        %v583 = vmax.f32 %v562, 0.0
        %v584 = vmax.f32 %v566, 0.0
        %v585 = vmax.f32 %v568, 0.0
        %v586 = vmax.f32 %v572, 0.0
        %v587 = vmax.f32 %v574, 0.0
        %v588 = vmax.f32 %v578, 0.0
        %v589 = vmax.f32 %v580, 0.0
        %v590 = vld [vmem:[%s4] sm:$0xff]
        %v591 = vld [vmem:[%s4 + $0x8] sm:$0xff]
        %v592 = vld [vmem:[%s4 + $0x10] sm:$0xff]
        %v593 = vld [vmem:[%s4 + $0x18] sm:$0xff]
        %v594 = vld [vmem:[%s5] sm:$0xff]
        %v595 = vld [vmem:[%s5 + $0x8] sm:$0xff]
        %v596 = vld [vmem:[%s5 + $0x10] sm:$0xff]
        %v597 = vld [vmem:[%s5 + $0x18] sm:$0xff]
        %599 = vset.pattern.permute.xlu0 0
        %600 = vperm.xlu0 %599, %v594
        %v601 = vpop.permute.xlu0 %600
        %604 = vset.pattern.permute.xlu0 0
        %605 = vperm.xlu0 %604, %v595
        %v606 = vpop.permute.xlu0 %605
        %609 = vset.pattern.permute.xlu0 0
        %610 = vperm.xlu0 %609, %v596
        %v611 = vpop.permute.xlu0 %610
        %614 = vset.pattern.permute.xlu0 0
        %615 = vperm.xlu0 %614, %v597
        %v616 = vpop.permute.xlu0 %615
        %vm618 = vcmask 261120
        %v620 = vsel %vm618, %v590, 0
        %v623 = vsel %vm618, %v591, 0
        %v626 = vsel %vm618, %v592, 0
        %v629 = vsel %vm618, %v593, 0
        %631 = vmatprep.subr.mxu0 %v583
        %632 = vmatpush1.msra.mxu0 %v582
        %633 = vmatprep.subr.mxu0 %v585
        %634 = vmatpush1.msra.mxu0 %v584
        %635 = vmatprep.subr.mxu0 %v587
        %636 = vmatpush1.msra.mxu0 %v586
        %637 = vmatprep.subr.mxu0 %v589
        %638 = vmatpush1.msra.mxu0 %v588
        %639 = vmatprep.subr.mxu0 0.0
        %640 = vmatpush1.msra.mxu0 0.0
        %641 = vmatprep.subr.mxu0 0.0
        %642 = vmatpush1.msra.mxu0 0.0
        %643 = vmatprep.subr.mxu0 0.0
        %644 = vmatpush1.msra.mxu0 0.0
        %645 = vmatprep.subr.mxu0 0.0
        %646 = vmatpush1.msra.mxu0 0.0
        %647 = vmatprep.subr.mxu0 0.0
        %648 = vmatpush1.msra.mxu0 0.0
        %649 = vmatprep.subr.mxu0 0.0
        %650 = vmatpush1.msra.mxu0 0.0
        %651 = vmatprep.subr.mxu0 0.0
        %652 = vmatpush1.msra.mxu0 0.0
        %653 = vmatprep.subr.mxu0 0.0
        %654 = vmatpush1.msra.mxu0 0.0
        %655 = vmatprep.subr.mxu0 0.0
        %656 = vmatpush1.msra.mxu0 0.0
        %657 = vmatprep.subr.mxu0 0.0
        %658 = vmatpush1.msra.mxu0 0.0
        %659 = vmatprep.subr.mxu0 0.0
        %660 = vmatpush1.msra.mxu0 0.0
        %661 = vmatprep.subr.mxu0 0.0
        %662 = vmatpush1.msra.mxu0 0.0
        %663 = vmatprep.subr.mxu0 0.0
        %664 = vmatpush1.msra.mxu0 0.0
        %665 = vmatprep.subr.mxu0 0.0
        %666 = vmatpush1.msra.mxu0 0.0
        %667 = vmatprep.subr.mxu0 0.0
        %668 = vmatpush1.msra.mxu0 0.0
        %669 = vmatprep.subr.mxu0 0.0
        %670 = vmatpush1.msra.mxu0 0.0
        %671 = vmatprep.subr.mxu0 0.0
        %672 = vmatpush1.msra.mxu0 0.0
        %673 = vmatprep.subr.mxu0 0.0
        %674 = vmatpush1.msra.mxu0 0.0
        %675 = vmatprep.subr.mxu0 0.0
        %676 = vmatpush1.msra.mxu0 0.0
        %677 = vmatprep.subr.mxu0 0.0
        %678 = vmatpush1.msra.mxu0 0.0
        %679 = vmatprep.subr.mxu0 0.0
        %680 = vmatpush1.msra.mxu0 0.0
        %681 = vmatprep.subr.mxu0 0.0
        %682 = vmatpush1.msra.mxu0 0.0
        %683 = vmatprep.subr.mxu0 0.0
        %684 = vmatpush1.msra.mxu0 0.0
        %685 = vmatprep.subr.mxu0 0.0
        %686 = vmatpush1.msra.mxu0 0.0
        %687 = vmatprep.subr.mxu0 0.0
        %688 = vmatpush1.msra.mxu0 0.0
        %689 = vmatprep.subr.mxu0 0.0
        %690 = vmatpush1.msra.mxu0 0.0
        %691 = vmatprep.subr.mxu0 0.0
        %692 = vmatpush1.msra.mxu0 0.0
        %693 = vmatprep.subr.mxu0 0.0
        %694 = vmatpush1.msra.mxu0 0.0
        %695 = vmatprep.mubr.f32.mxu0 0.0
        %696 = vmatmul.mubr.f32.gmra.mrb[0].mxu0 %v620
        %v697 = vpop.f32.mrb[0].mxu0
        %v698 = vadd.f32 %v601, %v697
        %v699 = vpop.f32.mrb[0].mxu0
        %v700 = vadd.f32 %v601, %v699
        %701 = vmatprep.mubr.f32.mxu0 0.0
        %702 = vmatmul.mubr.f32.gmra.mrb[0].mxu0 %v623
        %v703 = vpop.f32.mrb[0].mxu0
        %v704 = vadd.f32 %v606, %v703
        %v705 = vpop.f32.mrb[0].mxu0
        %v706 = vadd.f32 %v606, %v705
        %707 = vmatprep.mubr.f32.mxu0 0.0
        %708 = vmatmul.mubr.f32.gmra.mrb[0].mxu0 %v626
        %v709 = vpop.f32.mrb[0].mxu0
        %v710 = vadd.f32 %v611, %v709
        %v711 = vpop.f32.mrb[0].mxu0
        %v712 = vadd.f32 %v611, %v711
        %713 = vmatprep.mubr.f32.mxu0 0.0
        %714 = vmatmul.mubr.f32.gmra.mrb[0].mxu0 %v629
        %v715 = vpop.f32.mrb[0].mxu0
        %v716 = vadd.f32 %v616, %v715
        %v717 = vpop.f32.mrb[0].mxu0
        %v718 = vadd.f32 %v616, %v717
        %719 = vdwg.mxu0
        %v720 = vmax.f32 %v698, 0.0
        %v721 = vmax.f32 %v700, 0.0
        %v722 = vmax.f32 %v704, 0.0
        %v723 = vmax.f32 %v706, 0.0
        %v724 = vmax.f32 %v710, 0.0
        %v725 = vmax.f32 %v712, 0.0
        %v726 = vmax.f32 %v716, 0.0
        %v727 = vmax.f32 %v718, 0.0
        %v728 = vld [vmem:[%s6] sm:$0xff]
        %v729 = vld [vmem:[%s7] sm:$0xff]
        %731 = vset.pattern.permute.xlu0 0
        %732 = vperm.xlu0 %731, %v729
        %v733 = vpop.permute.xlu0 %732
        %v736 = vsel %vm618, %v728, 0
        %738 = vmatprep.subr.mxu0 %v721
        %739 = vmatpush1.msra.mxu0 %v720
        %740 = vmatprep.subr.mxu0 %v723
        %741 = vmatpush1.msra.mxu0 %v722
        %742 = vmatprep.subr.mxu0 %v725
        %743 = vmatpush1.msra.mxu0 %v724
        %744 = vmatprep.subr.mxu0 %v727
        %745 = vmatpush1.msra.mxu0 %v726
        %746 = vmatprep.subr.mxu0 0.0
        %747 = vmatpush1.msra.mxu0 0.0
        %748 = vmatprep.subr.mxu0 0.0
        %749 = vmatpush1.msra.mxu0 0.0
        %750 = vmatprep.subr.mxu0 0.0
        %751 = vmatpush1.msra.mxu0 0.0
        %752 = vmatprep.subr.mxu0 0.0
        %753 = vmatpush1.msra.mxu0 0.0
        %754 = vmatprep.subr.mxu0 0.0
        %755 = vmatpush1.msra.mxu0 0.0
        %756 = vmatprep.subr.mxu0 0.0
        %757 = vmatpush1.msra.mxu0 0.0
        %758 = vmatprep.subr.mxu0 0.0
        %759 = vmatpush1.msra.mxu0 0.0
        %760 = vmatprep.subr.mxu0 0.0
        %761 = vmatpush1.msra.mxu0 0.0
        %762 = vmatprep.subr.mxu0 0.0
        %763 = vmatpush1.msra.mxu0 0.0
        %764 = vmatprep.subr.mxu0 0.0
        %765 = vmatpush1.msra.mxu0 0.0
        %766 = vmatprep.subr.mxu0 0.0
        %767 = vmatpush1.msra.mxu0 0.0
        %768 = vmatprep.subr.mxu0 0.0
        %769 = vmatpush1.msra.mxu0 0.0
        %770 = vmatprep.subr.mxu0 0.0
        %771 = vmatpush1.msra.mxu0 0.0
        %772 = vmatprep.subr.mxu0 0.0
        %773 = vmatpush1.msra.mxu0 0.0
        %774 = vmatprep.subr.mxu0 0.0
        %775 = vmatpush1.msra.mxu0 0.0
        %776 = vmatprep.subr.mxu0 0.0
        %777 = vmatpush1.msra.mxu0 0.0
        %778 = vmatprep.subr.mxu0 0.0
        %779 = vmatpush1.msra.mxu0 0.0
        %780 = vmatprep.subr.mxu0 0.0
        %781 = vmatpush1.msra.mxu0 0.0
        %782 = vmatprep.subr.mxu0 0.0
        %783 = vmatpush1.msra.mxu0 0.0
        %784 = vmatprep.subr.mxu0 0.0
        %785 = vmatpush1.msra.mxu0 0.0
        %786 = vmatprep.subr.mxu0 0.0
        %787 = vmatpush1.msra.mxu0 0.0
        %788 = vmatprep.subr.mxu0 0.0
        %789 = vmatpush1.msra.mxu0 0.0
        %790 = vmatprep.subr.mxu0 0.0
        %791 = vmatpush1.msra.mxu0 0.0
        %792 = vmatprep.subr.mxu0 0.0
        %793 = vmatpush1.msra.mxu0 0.0
        %794 = vmatprep.subr.mxu0 0.0
        %795 = vmatpush1.msra.mxu0 0.0
        %796 = vmatprep.subr.mxu0 0.0
        %797 = vmatpush1.msra.mxu0 0.0
        %798 = vmatprep.subr.mxu0 0.0
        %799 = vmatpush1.msra.mxu0 0.0
        %800 = vmatprep.subr.mxu0 0.0
        %801 = vmatpush1.msra.mxu0 0.0
        %802 = vmatprep.mubr.f32.mxu0 0.0
        %803 = vmatmul.mubr.f32.gmra.mrb[0].mxu0 %v736
        %v804 = vpop.f32.mrb[0].mxu0
        %v805 = vadd.f32 %v733, %v804
        %v806 = vpop.f32.mrb[0].mxu0
        %v807 = vadd.f32 %v733, %v806
        %808 = vdwg.mxu0
        %vm809 = vcmp.gt.f32.partialorder %v450, 0.1
        %vm810 = vcmp.gt.f32.partialorder %v451, 0.1
        %v811 = vsel %vm809, 1, 0
        %v812 = vsel %vm810, 1, 0
        %v813 = vcvt.s32.f32 %v811
        %v814 = vcvt.s32.f32 %v812
        %s815 = sld [smem:[#allocation3]]
        %s816 = scvt.s32.f32 %s815
        %s817 = smul.f32 %s816, 0.2
        %v818 = vstv %s817
        %v819 = vmul.f32 %v813, %v818
        %v820 = vmul.f32 %v814, %v818
        %v821 = vlaneseq
        %v822 = vshrl.u32 %v821, 7
        %vm823 = vcmp.eq.s32.totalorder %v822, 3
        %v824 = vadd.f32 %v279, %v805
        %v825 = vadd.f32 %v280, %v807
        %v826 = vsel %vm823, 1, 0
        %vm827 = vcmp.eq.s32.totalorder %v826, 1
        %v828 = vlaneseq
        %v829 = vshrl.u32 %v828, 7
        %v830 = vsub.s32 3, %v829
        %v831 = vrot.slane %v819, %v830
        %v832 = vlaneseq
        %v833 = vshrl.u32 %v832, 7
        %v834 = vsub.s32 3, %v833
        %v835 = vrot.slane %v820, %v834
        %v836 = vsel %vm827, %v831, 0.0
        %v837 = vsel %vm827, %v835, 0.0
        %v838 = vadd.f32 %v824, %v836
        %v839 = vadd.f32 %v825, %v837
        %v840 = vsel %vm823, 0.0, -1.0
        %v841 = vmax.f32 %v840, %v838
        %v842 = vmax.f32 %v840, %v839
        %v843 = vmin.f32 %v841, 1.0
        %v844 = vmin.f32 %v842, 1.0
        %845 = vst [vmem:[%s273] sm:$0xff] %v843
        %846 = vst [vmem:[%s273 + $0x8] sm:$0xff] %v844
        %s847 = sand.u32 %s183, 1
        %s848 = scalar_lea.sflag [#allocation5], %s847
        %s849 = sand.u32 %s183, 1
        %s850 = smul.addr %s849, 16
        %s851 = scalar_lea.vmem [#allocation4], %s850
        // Predicated region
        $region49: #{tpu_custom_call.1} parent=47 // pred_check
          %p852 = pneg %p193
        $region50: #{tpu_custom_call.1} parent=47 // pred_check_branch
          %854 = sbr.rel (%p852) target = $region52
        $region51: #{tpu_custom_call.1} parent=47 // pred_region
          %s856 = ssub.s32 256, 256
          %857 = vsyncadd %s848, %s856
          %s858 = smul.addr %s23, 2
          %s859 = smul.addr %s858, 128
          %s860 = scalar_lea.hbm %s8, %s859
          %s862 = sshll.u32 %s851, 4
          %s863 = int_to_ptr.vmem [resolvable:$true] %s862
          %865 = dma.vmem_to_hbm [thread:$0]  %s863, 256, %s860, %s848
        $region52: #{tpu_custom_call.1} parent=47 // pred_fallthru
          _
      $region48: #{tpu_custom_call.1} parent=5 // pred_fallthru
        _
      %p866 = scmp.le.s32.totalorder 2, %s18
      // Predicated region
      $region53: #{tpu_custom_call.1} parent=5 // pred_check
        %p867 = pneg %p866
      $region54: #{tpu_custom_call.1} parent=5 // pred_check_branch
        %869 = sbr.rel (%p867) target = $region56
      $region55: #{tpu_custom_call.1} parent=5 // pred_region
        %s870 = ssub.s32 %s18, 2
        // Predicated region
        $region57: #{tpu_custom_call.1} parent=55 // pred_check
          %p871 = pneg %p199
        $region58: #{tpu_custom_call.1} parent=55 // pred_check_branch
          %873 = sbr.rel (%p871) target = $region60
        $region59: #{tpu_custom_call.1} parent=55 // pred_region
          %s874 = sand.u32 %s184, 1
          %s875 = scalar_lea.sflag [#allocation5], %s874
          %s876 = sand.u32 %s184, 1
          %s877 = smul.addr %s876, 16
          %s878 = scalar_lea.vmem [#allocation4], %s877
          %879 = dma.done %s875, 256
        $region60: #{tpu_custom_call.1} parent=55 // pred_fallthru
          _
      $region56: #{tpu_custom_call.1} parent=5 // pred_fallthru
        _
    $region6: #{tpu_custom_call.1} parent=1 // loop_footer
      %s22 = sadd.s32 1, %s18
    $region7: #{tpu_custom_call.1} parent=1 // loop_footer_branch
      %17 = sbr.rel target = $region3
    $region8: #{tpu_custom_call.1} parent=1 // loop_exit
      _
    %880 = vsyncpa [#allocation5], 1
    %s881 = scalar_lea.sflag [#allocation5], 1
    %882 = vsyncpa %s881, 1

</llo_original>
